<compile_context>
chip_gen: v6e
topology: v6e:2x2x1
jax: 0.10.0
libtpu: 0.0.40
codegen_flags: <defaults>
</compile_context>

<pallas_src>
import functools
import math

import jax
import jax.numpy as jnp
from jax.experimental import pallas as pl
from jax.experimental.pallas import tpu as pltpu


def _sru_kernel(x_ref, side_ref, m_ref, mt_ref, out_ref, *,
                group_num, eps, hw, chans):
    """x_ref: (R, HW) row tile, R = nb*chans rows in image-major order."""
    half = chans // 2
    cg = chans // group_num
    n = float(cg * hw)                        # elements per norm group

    xf = x_ref[...].astype(jnp.float32)       # (R, HW)

    gw = side_ref[:, 0:1]                     # gamma * softmax(gamma)   (R, 1)
    bw = side_ref[:, 1:2]                     # beta  * softmax(gamma)   (R, 1)
    info = side_ref[:, 2:3]                   # info gate {0,1}          (R, 1)
    lo = side_ref[:, 3:4]                     # lower-half-channel mask  (R, 1)

    # ---- single pass stats: two back-to-back lane (XLU) reductions ----
    ssum = jnp.sum(xf, axis=-1, keepdims=True)              # (R, 1)
    ssq = jnp.sum(xf * xf, axis=-1, keepdims=True)          # (R, 1)
    st = jnp.concatenate([ssum, ssq], axis=1)               # (R, 2)

    # ---- group combine + scatter back: 2 small MXU dots for the whole tile ----
    grp = jnp.dot(m_ref[...], st, preferred_element_type=jnp.float32)      # (nb*G, 2)
    back = jnp.dot(mt_ref[...], grp, preferred_element_type=jnp.float32)   # (R, 2)
    sum_c = back[:, 0:1]
    sq_c = back[:, 1:2]

    mean_c = sum_c * (1.0 / n)
    # ddof=1 variance (matches torch.std); clamp guards cancellation rounding.
    var_c = jnp.maximum(sq_c - sum_c * mean_c, 0.0) * (1.0 / (n - 1.0))
    std_c = jnp.sqrt(var_c)

    # Folded norm + affine + softmax gate:
    #   sigmoid(gn_x * w_gamma) == sigmoid(x * a + bias)
    a = gw / (std_c + eps)                                   # (R, 1)
    bias = bw - mean_c * a                                   # (R, 1)
    rew = jax.nn.sigmoid(xf * a + bias)                      # (R, HW) f32

    # Elementwise tail in the I/O dtype when it is 16-bit (bf16 VPU on
    # v6e/v7x keeps the tail memory-bound); f32 I/O stays f32 everywhere.
    lowp = jnp.dtype(out_ref.dtype).itemsize < 4
    if lowp:
        rew = rew.astype(out_ref.dtype)
        xt = x_ref[...]
        info_t = info.astype(out_ref.dtype)
        lo_t = lo.astype(out_ref.dtype)
    else:
        xt = xf
        info_t = info
        lo_t = lo

    rx = rew * xt
    x1 = info_t * rx                                         # info-gated
    x2 = rx - x1                                             # (1 - info)-gated

    # Cross-half reconstruction, fused into one lane-dense full-tile store:
    #   out[r] = x1[r] + x2[partner(r)], partner = opposite channel half of
    #   the same image.  Rows are image-major, so the partner is +half rows
    #   for the lower half-channels and -half rows for the upper half.  The
    #   rolled entries that wrap across image/tile boundaries are never
    #   selected by the blend mask.
    x2_up = jnp.roll(x2, -half, axis=0)                      # row r <- x2[r + half]
    x2_dn = jnp.roll(x2, half, axis=0)                       # row r <- x2[r - half]
    out = x1 + lo_t * x2_up + (1.0 - lo_t) * x2_dn

    out_ref[...] = out.astype(out_ref.dtype)


def _choose_batch_tile(N, C, HW, group_num):
    """Images per grid step: ~4 MiB f32 working set, small one-hot matrices,
    sublane-aligned row blocks, and >= 2 grid steps when N > 1 (v7x: 2 TCs)."""
    HWp = ((HW + 127) // 128) * 128
    img_f32 = C * HWp * 4
    cap = max(1, (4 << 20) // img_f32)
    # keep each block-diagonal membership matrix <= ~2 MiB: 4*(nb*G)*(nb*C)
    cap_m = max(1, math.isqrt(max(1, (2 << 20) // (4 * group_num * C))))
    cap = max(1, min(cap, cap_m, 256, N))

    def ok(nb):
        return N % nb == 0 and ((nb * C) % 8 == 0 or nb == N)

    for lim in (min(cap, max(1, N // 2)), cap, N):
        for nb in range(lim, 0, -1):
            if ok(nb):
                return nb
    return N


def sru_forward(x_nchw, gamma, beta, *, group_num, gate_threshold=0.5,
                eps=1e-10, batch_tile=None):
    N, C, H, W = x_nchw.shape
    assert C >= group_num and C % group_num == 0 and C % 2 == 0
    HW = H * W
    dtype = x_nchw.dtype

    nb = batch_tile if batch_tile is not None else _choose_batch_tile(N, C, HW, group_num)
    assert N % nb == 0 and ((nb * C) % 8 == 0 or nb == N)
    R = nb * C

    # Free metadata reshape -- no pad, no extra HBM pass.
    x2d = x_nchw.reshape(N * C, HW)

    # Batch-invariant per-channel vectors, hoisted out of the kernel and
    # folded into a single (R, 4) side operand: [gw, bw, info, lower-half].
    g = gamma.reshape(C).astype(jnp.float32)
    b = beta.reshape(C).astype(jnp.float32)
    w_gamma = jax.nn.softmax(g)
    gw = g * w_gamma
    bw = b * w_gamma
    info = (w_gamma > gate_threshold).astype(jnp.float32)
    lo = (jnp.arange(C) < (C // 2)).astype(jnp.float32)
    side = jnp.tile(jnp.stack([gw, bw, info, lo], axis=1), (nb, 1))   # (R, 4)

    # Block-diagonal one-hot group membership: kron(I_nb, M_c).
    cg = C // group_num
    m_c = (jnp.arange(C)[None, :] // cg ==
           jnp.arange(group_num)[:, None]).astype(jnp.float32)        # (G, C)
    M = jnp.kron(jnp.eye(nb, dtype=jnp.float32), m_c)                 # (nb*G, R)
    Mt = M.T                                                          # (R, nb*G)

    # Honest VMEM budget: double-buffered native in/out blocks + f32
    # temporaries, capped at 48 MiB so it fits v7x's 64 MiB physical VMEM
    # (also fine on v5e/v6e's 128 MiB).
    HWp = ((HW + 127) // 128) * 128
    blk_native = R * HWp * jnp.dtype(dtype).itemsize
    blk_f32 = R * HWp * 4
    vmem_limit = int(min(max(32 << 20, 4 * blk_native + 6 * blk_f32 + (4 << 20)),
                         48 << 20))

    kernel = functools.partial(_sru_kernel, group_num=group_num, eps=eps,
                               hw=HW, chans=C)

    out = pl.pallas_call(
        kernel,
        out_shape=jax.ShapeDtypeStruct((N * C, HW), dtype),
        grid_spec=pltpu.PrefetchScalarGridSpec(
            num_scalar_prefetch=0,
            grid=(N // nb,),
            in_specs=[
                pl.BlockSpec((R, HW), lambda i: (i, 0)),
                pl.BlockSpec((R, 4), lambda i: (0, 0)),
                pl.BlockSpec((nb * group_num, R), lambda i: (0, 0)),
                pl.BlockSpec((R, nb * group_num), lambda i: (0, 0)),
            ],
            out_specs=pl.BlockSpec((R, HW), lambda i: (i, 0)),
        ),
        compiler_params=pltpu.CompilerParams(
            dimension_semantics=("parallel",),
            vmem_limit_bytes=vmem_limit,
        ),
    )(x2d, side, M, Mt)

    return out.reshape(N, C, H, W)


def sru_reference(x, gamma, beta, *, group_num, gate_threshold=0.5, eps=1e-10):
    """Pure-JAX mirror of the PyTorch module (torch.std is unbiased, ddof=1)."""
    N, C, H, W = x.shape
    xv = x.reshape(N, group_num, -1)
    mean = xv.mean(axis=2, keepdims=True)
    std = jnp.std(xv, axis=2, keepdims=True, ddof=1)
    xv = (xv - mean) / (std + eps)
    xv = xv.reshape(N, C, H, W)
    g = gamma.reshape(1, C, 1, 1)
    b = beta.reshape(1, C, 1, 1)
    gn_x = xv * g + b
    w_gamma = jax.nn.softmax(gamma.reshape(C)).reshape(1, C, 1, 1)
    rew = jax.nn.sigmoid(gn_x * w_gamma)
    info = (w_gamma > gate_threshold).astype(x.dtype)
    x1 = info * rew * x
    x2 = (1.0 - info) * rew * x
    half = C // 2
    return jnp.concatenate(
        [x1[:, :half] + x2[:, half:], x1[:, half:] + x2[:, :half]], axis=1)


if __name__ == "__main__":
    key = jax.random.PRNGKey(0)
    k_x, k_g = jax.random.split(key)

    N, C, H, W = 2, 16, 16, 16          # oup_channels = 16
    GROUP_NUM = 4                        # group_num (c_num >= group_num)

    x = jax.random.normal(k_x, (N, C, H, W), dtype=jnp.float32)
    gamma = jax.random.normal(k_g, (C, 1, 1), dtype=jnp.float32)   # torch.randn(C,1,1)
    beta = jnp.zeros((C, 1, 1), dtype=jnp.float32)                  # torch.zeros(C,1,1)

    out = sru_forward(x, gamma, beta, group_num=GROUP_NUM, gate_threshold=0.5)
    out = jax.block_until_ready(out)

    ref = sru_reference(x, gamma, beta, group_num=GROUP_NUM, gate_threshold=0.5)
    assert out.shape == (N, C, H, W)
    max_err = float(jnp.max(jnp.abs(out - ref)))
    assert jnp.allclose(out, ref, atol=2e-3, rtol=2e-3), max_err

    print("KERNEL_OK")
</pallas_src>

<mosaic_0001>
module attributes {stable_mosaic.version = 11 : i64} {
  func.func @_sru_kernel(%arg0: i32, %arg1: memref<16x256xf32, #tpu.memory_space<vmem>>, %arg2: memref<16x4xf32, #tpu.memory_space<vmem>>, %arg3: memref<4x16xf32, #tpu.memory_space<vmem>>, %arg4: memref<16x4xf32, #tpu.memory_space<vmem>>, %arg5: memref<16x256xf32, #tpu.memory_space<vmem>>) attributes {dimension_semantics = [#tpu.dimension_semantics<parallel>], iteration_bounds = array<i64: 2>, scalar_prefetch = 0 : i64, scratch_operands = 0 : i64, tpu.core_type = #tpu.core_type<tc>, window_params = [{transform_indices = @transform_0, window_bounds = array<i64: 16, 256>}, {pipeline_mode = #tpu.pipeline_mode<synchronous>, transform_indices = @transform_1, window_bounds = array<i64: 16, 4>}, {pipeline_mode = #tpu.pipeline_mode<synchronous>, transform_indices = @transform_2, window_bounds = array<i64: 4, 16>}, {pipeline_mode = #tpu.pipeline_mode<synchronous>, transform_indices = @transform_3, window_bounds = array<i64: 16, 4>}, {transform_indices = @transform_4, window_bounds = array<i64: 16, 256>}]} {
    %c0 = arith.constant 0 : index
    %c0_0 = arith.constant 0 : index
    %0 = vector.load %arg1[%c0, %c0_0] : memref<16x256xf32, #tpu.memory_space<vmem>>, vector<16x256xf32>
    %c0_1 = arith.constant 0 : index
    %c0_2 = arith.constant 0 : index
    %1 = vector.load %arg2[%c0_1, %c0_2] : memref<16x4xf32, #tpu.memory_space<vmem>>, vector<16x1xf32>
    %c0_3 = arith.constant 0 : index
    %c1 = arith.constant 1 : index
    %2 = vector.load %arg2[%c0_3, %c1] : memref<16x4xf32, #tpu.memory_space<vmem>>, vector<16x1xf32>
    %c0_4 = arith.constant 0 : index
    %c2 = arith.constant 2 : index
    %3 = vector.load %arg2[%c0_4, %c2] : memref<16x4xf32, #tpu.memory_space<vmem>>, vector<16x1xf32>
    %c0_5 = arith.constant 0 : index
    %c3 = arith.constant 3 : index
    %4 = vector.load %arg2[%c0_5, %c3] : memref<16x4xf32, #tpu.memory_space<vmem>>, vector<16x1xf32>
    %cst = arith.constant dense<0.000000e+00> : vector<16xf32>
    %5 = vector.multi_reduction <add>, %0, %cst [1] : vector<16x256xf32> to vector<16xf32>
    %6 = vector.shape_cast %5 : vector<16xf32> to vector<16x1xf32>
    %7 = arith.mulf %0, %0 : vector<16x256xf32>
    %cst_6 = arith.constant dense<0.000000e+00> : vector<16xf32>
    %8 = vector.multi_reduction <add>, %7, %cst_6 [1] : vector<16x256xf32> to vector<16xf32>
    %9 = vector.shape_cast %8 : vector<16xf32> to vector<16x1xf32>
    %10 = tpu.concatenate %6, %9 in 1 : vector<16x1xf32>, vector<16x1xf32> -> vector<16x2xf32>
    %c0_7 = arith.constant 0 : index
    %c0_8 = arith.constant 0 : index
    %11 = vector.load %arg3[%c0_7, %c0_8] : memref<4x16xf32, #tpu.memory_space<vmem>>, vector<4x16xf32>
    %cst_9 = arith.constant dense<0.000000e+00> : vector<4x2xf32>
    %12 = tpu.matmul %11, %10, %cst_9 {dimension_numbers = #tpu.dot_dimension_numbers<[1], [0], [0], [1], [0, 0, 1, 1], [], []>} : vector<4x16xf32>, vector<16x2xf32>, vector<4x2xf32> -> vector<4x2xf32>
    %c0_10 = arith.constant 0 : index
    %c0_11 = arith.constant 0 : index
    %13 = vector.load %arg4[%c0_10, %c0_11] : memref<16x4xf32, #tpu.memory_space<vmem>>, vector<16x4xf32>
    %cst_12 = arith.constant dense<0.000000e+00> : vector<16x2xf32>
    %14 = tpu.matmul %13, %12, %cst_12 {dimension_numbers = #tpu.dot_dimension_numbers<[1], [0], [0], [1], [0, 0, 1, 1], [], []>} : vector<16x4xf32>, vector<4x2xf32>, vector<16x2xf32> -> vector<16x2xf32>
    %15 = vector.extract_strided_slice %14 {offsets = [0, 0], sizes = [16, 1], strides = [1, 1]} : vector<16x2xf32> to vector<16x1xf32>
    %16 = vector.extract_strided_slice %14 {offsets = [0, 1], sizes = [16, 1], strides = [1, 1]} : vector<16x2xf32> to vector<16x1xf32>
    %cst_13 = arith.constant 9.765625E-4 : f32
    %17 = vector.broadcast %cst_13 : f32 to vector<16x1xf32>
    %18 = arith.mulf %15, %17 : vector<16x1xf32>
    %19 = arith.mulf %15, %18 : vector<16x1xf32>
    %20 = arith.subf %16, %19 : vector<16x1xf32>
    %cst_14 = arith.constant 0.000000e+00 : f32
    %21 = vector.broadcast %cst_14 : f32 to vector<16x1xf32>
    %22 = arith.maximumf %20, %21 : vector<16x1xf32>
    %cst_15 = arith.constant 9.77517105E-4 : f32
    %23 = vector.broadcast %cst_15 : f32 to vector<16x1xf32>
    %24 = arith.mulf %22, %23 : vector<16x1xf32>
    %25 = math.sqrt %24 : vector<16x1xf32>
    %cst_16 = arith.constant 1.000000e-10 : f32
    %26 = vector.broadcast %cst_16 : f32 to vector<16x1xf32>
    %27 = arith.addf %25, %26 : vector<16x1xf32>
    %28 = arith.divf %1, %27 : vector<16x1xf32>
    %29 = arith.mulf %18, %28 : vector<16x1xf32>
    %30 = arith.subf %2, %29 : vector<16x1xf32>
    %31 = vector.broadcast %28 : vector<16x1xf32> to vector<16x256xf32>
    %32 = arith.mulf %0, %31 : vector<16x256xf32>
    %33 = vector.broadcast %30 : vector<16x1xf32> to vector<16x256xf32>
    %34 = arith.addf %32, %33 : vector<16x256xf32>
    %35 = arith.negf %34 : vector<16x256xf32>
    %36 = math.exp %35 : vector<16x256xf32>
    %cst_17 = arith.constant 1.000000e+00 : f32
    %37 = vector.broadcast %cst_17 : f32 to vector<16x256xf32>
    %38 = arith.addf %37, %36 : vector<16x256xf32>
    %39 = arith.divf %37, %38 : vector<16x256xf32>
    %40 = arith.mulf %39, %0 : vector<16x256xf32>
    %41 = vector.broadcast %3 : vector<16x1xf32> to vector<16x256xf32>
    %42 = arith.mulf %41, %40 : vector<16x256xf32>
    %43 = arith.subf %40, %42 : vector<16x256xf32>
    %44 = vector.extract_strided_slice %43 {offsets = [8, 0], sizes = [8, 256], strides = [1, 1]} : vector<16x256xf32> to vector<8x256xf32>
    %45 = vector.extract_strided_slice %43 {offsets = [0, 0], sizes = [8, 256], strides = [1, 1]} : vector<16x256xf32> to vector<8x256xf32>
    %46 = tpu.concatenate %44, %45 in 0 : vector<8x256xf32>, vector<8x256xf32> -> vector<16x256xf32>
    %47 = vector.extract_strided_slice %43 {offsets = [8, 0], sizes = [8, 256], strides = [1, 1]} : vector<16x256xf32> to vector<8x256xf32>
    %48 = vector.extract_strided_slice %43 {offsets = [0, 0], sizes = [8, 256], strides = [1, 1]} : vector<16x256xf32> to vector<8x256xf32>
    %49 = tpu.concatenate %47, %48 in 0 : vector<8x256xf32>, vector<8x256xf32> -> vector<16x256xf32>
    %50 = vector.broadcast %4 : vector<16x1xf32> to vector<16x256xf32>
    %51 = arith.mulf %50, %46 : vector<16x256xf32>
    %52 = arith.addf %42, %51 : vector<16x256xf32>
    %cst_18 = arith.constant 1.000000e+00 : f32
    %53 = vector.broadcast %cst_18 : f32 to vector<16x1xf32>
    %54 = arith.subf %53, %4 : vector<16x1xf32>
    %55 = vector.broadcast %54 : vector<16x1xf32> to vector<16x256xf32>
    %56 = arith.mulf %55, %49 : vector<16x256xf32>
    %57 = arith.addf %52, %56 : vector<16x256xf32>
    %c0_19 = arith.constant 0 : index
    %c0_20 = arith.constant 0 : index
    %58 = vector.load %arg5[%c0_19, %c0_20] : memref<16x256xf32, #tpu.memory_space<vmem>>, vector<16x256xf32>
    tpu.vector_store %arg5[%c0_19, %c0_20], %57 {strides = array<i32>} : memref<16x256xf32, #tpu.memory_space<vmem>>, vector<16x256xf32>,
    return
  }
  func.func @transform_0(%arg0: i32) -> (i32, i32) {
    %c0_i32 = arith.constant 0 : i32
    %c0_i32_0 = arith.constant 0 : i32
    return %arg0, %c0_i32 : i32, i32
  }
  func.func @transform_1(%arg0: i32) -> (i32, i32) {
    %c0_i32 = arith.constant 0 : i32
    %c0_i32_0 = arith.constant 0 : i32
    %c0_i32_1 = arith.constant 0 : i32
    return %c0_i32, %c0_i32_0 : i32, i32
  }
  func.func @transform_2(%arg0: i32) -> (i32, i32) {
    %c0_i32 = arith.constant 0 : i32
    %c0_i32_0 = arith.constant 0 : i32
    %c0_i32_1 = arith.constant 0 : i32
    return %c0_i32, %c0_i32_0 : i32, i32
  }
  func.func @transform_3(%arg0: i32) -> (i32, i32) {
    %c0_i32 = arith.constant 0 : i32
    %c0_i32_0 = arith.constant 0 : i32
    %c0_i32_1 = arith.constant 0 : i32
    return %c0_i32, %c0_i32_0 : i32, i32
  }
  func.func @transform_4(%arg0: i32) -> (i32, i32) {
    %c0_i32 = arith.constant 0 : i32
    %c0_i32_0 = arith.constant 0 : i32
    return %arg0, %c0_i32 : i32, i32
  }
}

</mosaic_0001>

<llo_original>
// kernel: tpu_custom_call.1
$region0: #{tpu_custom_call.1}
  #allocation0 [shape = 'u32[]', space=smem, size = 0x4, offset = 0x4, fixed_abs, tag = 'smem constant byte address 0x4 - core index']
  #allocation1 [shape = 'u32[144,128]{1,0:T(1,128)}', space=vmem, size = 0x12000, scoped, tag = 'internal scratch']
  %s0 = inlined_call_operand.hbm [shape: f32[32,256], index: 0, kind: input, shape index: {}]
  %s1 = inlined_call_operand.vmem [shape: f32[16,4], index: 1, kind: input, shape index: {}]
  %s2 = inlined_call_operand.vmem [shape: f32[4,16], index: 2, kind: input, shape index: {}]
  %s3 = inlined_call_operand.vmem [shape: f32[16,4], index: 3, kind: input, shape index: {}]
  %s4 = inlined_call_operand.hbm [shape: f32[32,256], index: 4, kind: output, shape index: {}]
  %s5 = sld [smem:[#allocation0]]
  $region53: #{tpu_custom_call.1} parent=0
    _
  %s7 = ssub.s32 1, %s5
  %s8 = scalar_select 0, %s7, %s5
  $region1: #{tpu_custom_call.1} parent=0
    #allocation2 [shape = 'u8[32768]{0}', space=vmem, size = 0x8000, scoped, tag = 'input window, operand 0']
    #allocation3 [shape = 's32[2]{0}', space=sflag, size = 0x8, scoped, tag = 'scoped memory for tpu_custom_call.1']
    #allocation4 [shape = 's32[2]{0}', space=sflag, size = 0x8, scoped, tag = 'scoped memory for tpu_custom_call.1']
    #allocation5 [shape = 'u8[32768]{0}', space=vmem, size = 0x8000, scoped, tag = 'output window, operand 0']
    %9 = vsyncpa [#allocation3], 0
    %s10 = scalar_lea.sflag [#allocation3], 1
    %11 = vsyncpa %s10, 0
    %12 = vsyncpa [#allocation4], 0
    %s13 = scalar_lea.sflag [#allocation4], 1
    %14 = vsyncpa %s13, 0
    loop: start=0, step=1, limit=4
    $region2: #{tpu_custom_call.1} parent=1 // loop_pre_header
      _
    $region3: #{tpu_custom_call.1} parent=1 // loop_header
      %s16 = sphi 0, %s20
      %p17 = scmp.ge.s32.totalorder %s16, 4
      %s26 = sphi 0, %s28
      %s29 = sphi 0, %s26
      %s30 = sphi 0, %s29
      %s46 = sphi 0, %s30
      %s50 = sphi 0, %s50
      %s52 = sphi 0, %s50
      %s53 = sphi 0, %s52
      %s67 = sphi 0, %s53
      %s71 = sphi 0, %s71
      %s73 = sphi 0, %s71
      %s74 = sphi 0, %s73
      %s88 = sphi 0, %s74
      %s92 = sphi 0, %s92
      %s94 = sphi 0, %s92
      %s95 = sphi 0, %s94
      %s109 = sphi 0, %s95
      %s115 = sphi 0, %s117
      %s118 = sphi 0, %s115
      %s119 = sphi 0, %s118
      %s135 = sphi 0, %s119
    $region4: #{tpu_custom_call.1} parent=1 // loop_header_branch
      %19 = sbr.rel (%p17) target = $region8
    $region5: #{tpu_custom_call.1} parent=1 // loop_body
      %s21 = ssub.s32 %s16, 1
      %s22 = ssub.s32 %s16, 2
      %s23 = sadd.s32 %s16, 1
      %s24 = ssub.s32 %s16, %s23
      %p25 = scmp.eq.s32.totalorder %s24, 0
      %s27 = sadd.s32 %s26, 1
      %s28 = scalar_select %p25, %s26, %s27
      %p31 = pneg %p25
      %p32 = scmp.eq.s32.totalorder %s16, 1
      %p33 = por %p31, %p32
      %p34 = scmp.ne.s32.totalorder %s26, %s29
      %p35 = scmp.eq.s32.totalorder %s16, 0
      %p36 = por %p34, %p35
      %p37 = scmp.ne.s32.totalorder %s26, %s29
      %p38 = scmp.eq.s32.totalorder %s21, 1
      %p39 = por %p37, %p38
      %p40 = scmp.ne.s32.totalorder %s29, %s30
      %p41 = scmp.eq.s32.totalorder %s21, 0
      %p42 = por %p40, %p41
      %p43 = scmp.ne.s32.totalorder %s29, %s30
      %p44 = scmp.eq.s32.totalorder %s22, 1
      %p45 = por %p43, %p44
      %p47 = scmp.ne.s32.totalorder %s30, %s46
      %p48 = scmp.eq.s32.totalorder %s22, 0
      %p49 = por %p47, %p48
      %s51 = sadd.s32 %s50, 1
      %p54 = scmp.eq.s32.totalorder %s16, 1
      %p55 = scmp.ne.s32.totalorder %s50, %s52
      %p56 = scmp.eq.s32.totalorder %s16, 0
      %p57 = por %p55, %p56
      %p58 = scmp.ne.s32.totalorder %s50, %s52
      %p59 = scmp.eq.s32.totalorder %s21, 1
      %p60 = por %p58, %p59
      %p61 = scmp.ne.s32.totalorder %s52, %s53
      %p62 = scmp.eq.s32.totalorder %s21, 0
      %p63 = por %p61, %p62
      %p64 = scmp.ne.s32.totalorder %s52, %s53
      %p65 = scmp.eq.s32.totalorder %s22, 1
      %p66 = por %p64, %p65
      %p68 = scmp.ne.s32.totalorder %s53, %s67
      %p69 = scmp.eq.s32.totalorder %s22, 0
      %p70 = por %p68, %p69
      %s72 = sadd.s32 %s71, 1
      %p75 = scmp.eq.s32.totalorder %s16, 1
      %p76 = scmp.ne.s32.totalorder %s71, %s73
      %p77 = scmp.eq.s32.totalorder %s16, 0
      %p78 = por %p76, %p77
      %p79 = scmp.ne.s32.totalorder %s71, %s73
      %p80 = scmp.eq.s32.totalorder %s21, 1
      %p81 = por %p79, %p80
      %p82 = scmp.ne.s32.totalorder %s73, %s74
      %p83 = scmp.eq.s32.totalorder %s21, 0
      %p84 = por %p82, %p83
      %p85 = scmp.ne.s32.totalorder %s73, %s74
      %p86 = scmp.eq.s32.totalorder %s22, 1
      %p87 = por %p85, %p86
      %p89 = scmp.ne.s32.totalorder %s74, %s88
      %p90 = scmp.eq.s32.totalorder %s22, 0
      %p91 = por %p89, %p90
      %s93 = sadd.s32 %s92, 1
      %p96 = scmp.eq.s32.totalorder %s16, 1
      %p97 = scmp.ne.s32.totalorder %s92, %s94
      %p98 = scmp.eq.s32.totalorder %s16, 0
      %p99 = por %p97, %p98
      %p100 = scmp.ne.s32.totalorder %s92, %s94
      %p101 = scmp.eq.s32.totalorder %s21, 1
      %p102 = por %p100, %p101
      %p103 = scmp.ne.s32.totalorder %s94, %s95
      %p104 = scmp.eq.s32.totalorder %s21, 0
      %p105 = por %p103, %p104
      %p106 = scmp.ne.s32.totalorder %s94, %s95
      %p107 = scmp.eq.s32.totalorder %s22, 1
      %p108 = por %p106, %p107
      %p110 = scmp.ne.s32.totalorder %s95, %s109
      %p111 = scmp.eq.s32.totalorder %s22, 0
      %p112 = por %p110, %p111
      %s113 = ssub.s32 %s16, %s23
      %p114 = scmp.eq.s32.totalorder %s113, 0
      %s116 = sadd.s32 %s115, 1
      %s117 = scalar_select %p114, %s115, %s116
      %p120 = pneg %p114
      %p121 = scmp.eq.s32.totalorder %s16, 1
      %p122 = por %p120, %p121
      %p123 = scmp.ne.s32.totalorder %s115, %s118
      %p124 = scmp.eq.s32.totalorder %s16, 0
      %p125 = por %p123, %p124
      %p126 = scmp.ne.s32.totalorder %s115, %s118
      %p127 = scmp.eq.s32.totalorder %s21, 1
      %p128 = por %p126, %p127
      %p129 = scmp.ne.s32.totalorder %s118, %s119
      %p130 = scmp.eq.s32.totalorder %s21, 0
      %p131 = por %p129, %p130
      %p132 = scmp.ne.s32.totalorder %s118, %s119
      %p133 = scmp.eq.s32.totalorder %s22, 1
      %p134 = por %p132, %p133
      %p136 = scmp.ne.s32.totalorder %s119, %s135
      %p137 = scmp.eq.s32.totalorder %s22, 0
      %p138 = por %p136, %p137
      %p139 = scmp.le.s32.totalorder 1, %s16
      %p140 = scmp.lt.s32.totalorder %s16, 3
      %p141 = pnand %p139, %p140
      %p142 = pneg %p141
      // Predicated region
      $region9: #{tpu_custom_call.1} parent=5 // pred_check
        _
      $region10: #{tpu_custom_call.1} parent=5 // pred_check_branch
        %144 = sbr.rel (%p141) target = $region12
      $region11: #{tpu_custom_call.1} parent=5 // pred_region
        %s145 = ssub.s32 %s16, 1
        // Predicated region
        $region13: #{tpu_custom_call.1} parent=11 // pred_check
          %p146 = pneg %p63
        $region14: #{tpu_custom_call.1} parent=11 // pred_check_branch
          %148 = sbr.rel (%p146) target = $region16
        $region15: #{tpu_custom_call.1} parent=11 // pred_region
          _
        $region16: #{tpu_custom_call.1} parent=11 // pred_fallthru
          _
        // Predicated region
        $region17: #{tpu_custom_call.1} parent=11 // pred_check
          %p149 = pneg %p84
        $region18: #{tpu_custom_call.1} parent=11 // pred_check_branch
          %151 = sbr.rel (%p149) target = $region20
        $region19: #{tpu_custom_call.1} parent=11 // pred_region
          _
        $region20: #{tpu_custom_call.1} parent=11 // pred_fallthru
          _
        // Predicated region
        $region21: #{tpu_custom_call.1} parent=11 // pred_check
          %p152 = pneg %p105
        $region22: #{tpu_custom_call.1} parent=11 // pred_check_branch
          %154 = sbr.rel (%p152) target = $region24
        $region23: #{tpu_custom_call.1} parent=11 // pred_region
          _
        $region24: #{tpu_custom_call.1} parent=11 // pred_fallthru
          _
      $region12: #{tpu_custom_call.1} parent=5 // pred_fallthru
        _
      %p155 = scmp.lt.s32.totalorder %s16, 2
      // Predicated region
      $region25: #{tpu_custom_call.1} parent=5 // pred_check
        %p156 = pneg %p155
      $region26: #{tpu_custom_call.1} parent=5 // pred_check_branch
        %158 = sbr.rel (%p156) target = $region28
      $region27: #{tpu_custom_call.1} parent=5 // pred_region
        // Predicated region
        $region29: #{tpu_custom_call.1} parent=27 // pred_check
          %p159 = pneg %p36
        $region30: #{tpu_custom_call.1} parent=27 // pred_check_branch
          %161 = sbr.rel (%p159) target = $region32
        $region31: #{tpu_custom_call.1} parent=27 // pred_region
          %s162 = sand.u32 %s26, 1
          %s163 = scalar_lea.sflag [#allocation3], %s162
          %s164 = sand.u32 %s26, 1
          %s165 = smul.addr %s164, 32
          %s166 = scalar_lea.vmem [#allocation2], %s165
          %s167 = smul.u32 2, %s16
          %s169 = ssub.s32 512, 512
          %170 = vsyncadd %s163, %s169
          %s171 = smul.addr %s167, 2
          %s172 = smul.addr %s171, 128
          %s173 = scalar_lea.hbm %s0, %s172
          %s174 = sshll.u32 %s166, 4
          %s175 = int_to_ptr.vmem [resolvable:$true] %s174
          %180 = dma.hbm_to_vmem [thread:$0]  %s173, 512, %s175, %s163, 256, 256, 16
        $region32: #{tpu_custom_call.1} parent=27 // pred_fallthru
          _
      $region28: #{tpu_custom_call.1} parent=5 // pred_fallthru
        _
      %p181 = scmp.le.s32.totalorder 1, %s16
      %p182 = scmp.lt.s32.totalorder %s16, 3
      %p183 = pnand %p181, %p182
      %p184 = pneg %p183
      // Predicated region
      $region33: #{tpu_custom_call.1} parent=5 // pred_check
        _
      $region34: #{tpu_custom_call.1} parent=5 // pred_check_branch
        %186 = sbr.rel (%p183) target = $region36
      $region35: #{tpu_custom_call.1} parent=5 // pred_region
        %s187 = ssub.s32 %s16, 1
        %s188 = sand.u32 %s29, 1
        %s189 = scalar_lea.sflag [#allocation3], %s188
        %s190 = sand.u32 %s29, 1
        %s191 = smul.addr %s190, 32
        %s192 = scalar_lea.vmem [#allocation2], %s191
        // Predicated region
        $region37: #{tpu_custom_call.1} parent=35 // pred_check
          %p193 = pneg %p42
        $region38: #{tpu_custom_call.1} parent=35 // pred_check_branch
          %195 = sbr.rel (%p193) target = $region40
        $region39: #{tpu_custom_call.1} parent=35 // pred_region
          %196 = dma.done %s189, 512
        $region40: #{tpu_custom_call.1} parent=35 // pred_fallthru
          _
        %s197 = sand.u32 %s29, 1
        %s198 = scalar_lea.sflag [#allocation3], %s197
        %s199 = sand.u32 %s29, 1
        %s200 = smul.addr %s199, 32
        %s201 = scalar_lea.vmem [#allocation2], %s200
        %p202 = pneg %p42
        %p203 = pneg %p39
        %p204 = pneg %p63
        %p205 = pneg %p60
        %p206 = pneg %p84
        %p207 = pneg %p81
        %p208 = pneg %p105
        %p209 = pneg %p102
        %p210 = pneg %p131
        %p211 = pneg %p128
        %s212 = sand.u32 %s118, 1
        %s213 = scalar_lea.sflag [#allocation4], %s212
        %s214 = sand.u32 %s118, 1
        %s215 = smul.addr %s214, 32
        %s216 = scalar_lea.vmem [#allocation5], %s215
        %s217 = smul.u32 2, %s21
        %s218 = smul.u32 2, %s21
        %v219 = vld [vmem:[%s192] sm:$0xff]
        %v220 = vld [vmem:[%s192 + $0x8] sm:$0xff]
        %v221 = vld [vmem:[%s192 + $0x10] sm:$0xff]
        %v222 = vld [vmem:[%s192 + $0x18] sm:$0xff]
        %v223 = vld [vmem:[%s1] sm:$0xff]
        %v224 = vld [vmem:[%s1 + $0x8] sm:$0xff]
        %v225 = vadd.f32 %v219, %v220
        %226 = vadd.xlane.f32.xlu0 %v225
        %v227 = vpop.xlane.xlu0 %226
        %v228 = vadd.f32 %v221, %v222
        %229 = vadd.xlane.f32.xlu0 %v228
        %v230 = vpop.xlane.xlu0 %229
        %v231 = vmul.f32 %v219, %v219
        %v232 = vmul.f32 %v220, %v220
        %v233 = vmul.f32 %v221, %v221
        %v234 = vmul.f32 %v222, %v222
        %v235 = vadd.f32 %v231, %v232
        %236 = vadd.xlane.f32.xlu0 %v235
        %v237 = vpop.xlane.xlu0 %236
        %v238 = vadd.f32 %v233, %v234
        %239 = vadd.xlane.f32.xlu0 %v238
        %v240 = vpop.xlane.xlu0 %239
        %vm241 = vcmask 7168
        %v242 = vsel %vm241, %v227, %v237
        %v243 = vsel %vm241, %v230, %v240
        %v244 = vld [vmem:[%s2] sm:$0xf]
        %vm245 = vcmask 130048
        %v247 = vsel %vm245, %v244, 0
        %249 = vmatprep.subr.mxu0 0.0
        %250 = vmatpush1.msra.mxu0 0.0
        %251 = vmatprep.subr.mxu0 0.0
        %252 = vmatpush1.msra.mxu0 0.0
        %253 = vmatprep.subr.mxu0 0.0
        %254 = vmatpush1.msra.mxu0 0.0
        %255 = vmatprep.subr.mxu0 0.0
        %256 = vmatpush1.msra.mxu0 0.0
        %257 = vmatprep.subr.mxu0 0.0
        %258 = vmatpush1.msra.mxu0 0.0
        %259 = vmatprep.subr.mxu0 0.0
        %260 = vmatpush1.msra.mxu0 0.0
        %261 = vmatprep.subr.mxu0 0.0
        %262 = vmatpush1.msra.mxu0 0.0
        %263 = vmatprep.subr.mxu0 0.0
        %264 = vmatpush1.msra.mxu0 0.0
        %265 = vmatprep.subr.mxu0 0.0
        %266 = vmatpush1.msra.mxu0 0.0
        %267 = vmatprep.subr.mxu0 0.0
        %268 = vmatpush1.msra.mxu0 0.0
        %269 = vmatprep.subr.mxu0 0.0
        %270 = vmatpush1.msra.mxu0 0.0
        %271 = vmatprep.subr.mxu0 0.0
        %272 = vmatpush1.msra.mxu0 0.0
        %273 = vmatprep.subr.mxu0 0.0
        %274 = vmatpush1.msra.mxu0 0.0
        %275 = vmatprep.subr.mxu0 0.0
        %276 = vmatpush1.msra.mxu0 0.0
        %277 = vmatprep.subr.mxu0 0.0
        %278 = vmatpush1.msra.mxu0 %v243
        %279 = vmatprep.subr.mxu0 0.0
        %280 = vmatpush1.msra.mxu0 %v242
        %281 = vmatprep.subr.mxu0 0.0
        %282 = vmatpush2.msra.mxu0 0.0
        %283 = vmatprep.subr.mxu0 0.0
        %284 = vmatpush2.msra.mxu0 0.0
        %285 = vmatprep.subr.mxu0 0.0
        %286 = vmatpush2.msra.mxu0 0.0
        %287 = vmatprep.subr.mxu0 0.0
        %288 = vmatpush2.msra.mxu0 0.0
        %289 = vmatprep.subr.mxu0 0.0
        %290 = vmatpush2.msra.mxu0 0.0
        %291 = vmatprep.subr.mxu0 0.0
        %292 = vmatpush2.msra.mxu0 0.0
        %293 = vmatprep.subr.mxu0 0.0
        %294 = vmatpush2.msra.mxu0 0.0
        %295 = vmatprep.subr.mxu0 0.0
        %296 = vmatpush2.msra.mxu0 0.0
        %297 = vmatprep.subr.mxu0 0.0
        %298 = vmatpush2.msra.mxu0 0.0
        %299 = vmatprep.subr.mxu0 0.0
        %300 = vmatpush2.msra.mxu0 0.0
        %301 = vmatprep.subr.mxu0 0.0
        %302 = vmatpush2.msra.mxu0 0.0
        %303 = vmatprep.subr.mxu0 0.0
        %304 = vmatpush2.msra.mxu0 0.0
        %305 = vmatprep.subr.mxu0 0.0
        %306 = vmatpush2.msra.mxu0 0.0
        %307 = vmatprep.subr.mxu0 0.0
        %308 = vmatpush2.msra.mxu0 0.0
        %309 = vmatprep.subr.mxu0 0.0
        %310 = vmatpush2.msra.mxu0 0.0
        %311 = vmatprep.subr.mxu0 0.0
        %312 = vmatpush2.msra.mxu0 0.0
        %313 = vmatprep.mubr.f32.mxu0 0.0
        %314 = vmatmul.mubr.f32.gmra.mxu0 %v247
        %v315 = vpop.f32.mrf.mxu0
        %v316 = vadd.f32 0.0, %v315
        %v317 = vpop.f32.mrf.mxu0
        %318 = vdwg.mxu0
        %v319 = vld [vmem:[%s3] sm:$0xff]
        %v320 = vld [vmem:[%s3 + $0x8] sm:$0xff]
        %vm321 = vcmask 31744
        %v323 = vsel %vm321, %v319, 0
        %v326 = vsel %vm321, %v320, 0
        %vm328 = vcmask 1043456
        %v330 = vsel %vm328, %v316, 0
        %332 = vmatprep.subr.mxu0 0.0
        %333 = vmatpush1.msra.mxu0 0.0
        %334 = vmatprep.subr.mxu0 0.0
        %335 = vmatpush1.msra.mxu0 0.0
        %336 = vmatprep.subr.mxu0 0.0
        %337 = vmatpush1.msra.mxu0 0.0
        %338 = vmatprep.subr.mxu0 0.0
        %339 = vmatpush1.msra.mxu0 0.0
        %340 = vmatprep.subr.mxu0 0.0
        %341 = vmatpush1.msra.mxu0 0.0
        %342 = vmatprep.subr.mxu0 0.0
        %343 = vmatpush1.msra.mxu0 0.0
        %344 = vmatprep.subr.mxu0 0.0
        %345 = vmatpush1.msra.mxu0 0.0
        %346 = vmatprep.subr.mxu0 0.0
        %347 = vmatpush1.msra.mxu0 0.0
        %348 = vmatprep.subr.mxu0 0.0
        %349 = vmatpush1.msra.mxu0 0.0
        %350 = vmatprep.subr.mxu0 0.0
        %351 = vmatpush1.msra.mxu0 0.0
        %352 = vmatprep.subr.mxu0 0.0
        %353 = vmatpush1.msra.mxu0 0.0
        %354 = vmatprep.subr.mxu0 0.0
        %355 = vmatpush1.msra.mxu0 0.0
        %356 = vmatprep.subr.mxu0 0.0
        %357 = vmatpush1.msra.mxu0 0.0
        %358 = vmatprep.subr.mxu0 0.0
        %359 = vmatpush1.msra.mxu0 0.0
        %360 = vmatprep.subr.mxu0 0.0
        %361 = vmatpush1.msra.mxu0 0.0
        %362 = vmatprep.subr.mxu0 0.0
        %363 = vmatpush1.msra.mxu0 %v330
        %364 = vmatprep.subr.mxu0 0.0
        %365 = vmatpush2.msra.mxu0 0.0
        %366 = vmatprep.subr.mxu0 0.0
        %367 = vmatpush2.msra.mxu0 0.0
        %368 = vmatprep.subr.mxu0 0.0
        %369 = vmatpush2.msra.mxu0 0.0
        %370 = vmatprep.subr.mxu0 0.0
        %371 = vmatpush2.msra.mxu0 0.0
        %372 = vmatprep.subr.mxu0 0.0
        %373 = vmatpush2.msra.mxu0 0.0
        %374 = vmatprep.subr.mxu0 0.0
        %375 = vmatpush2.msra.mxu0 0.0
        %376 = vmatprep.subr.mxu0 0.0
        %377 = vmatpush2.msra.mxu0 0.0
        %378 = vmatprep.subr.mxu0 0.0
        %379 = vmatpush2.msra.mxu0 0.0
        %380 = vmatprep.subr.mxu0 0.0
        %381 = vmatpush2.msra.mxu0 0.0
        %382 = vmatprep.subr.mxu0 0.0
        %383 = vmatpush2.msra.mxu0 0.0
        %384 = vmatprep.subr.mxu0 0.0
        %385 = vmatpush2.msra.mxu0 0.0
        %386 = vmatprep.subr.mxu0 0.0
        %387 = vmatpush2.msra.mxu0 0.0
        %388 = vmatprep.subr.mxu0 0.0
        %389 = vmatpush2.msra.mxu0 0.0
        %390 = vmatprep.subr.mxu0 0.0
        %391 = vmatpush2.msra.mxu0 0.0
        %392 = vmatprep.subr.mxu0 0.0
        %393 = vmatpush2.msra.mxu0 0.0
        %394 = vmatprep.subr.mxu0 0.0
        %395 = vmatpush2.msra.mxu0 0.0
        %396 = vmatprep.mubr.f32.mxu0 0.0
        %397 = vmatmul.mubr.f32.gmra.mxu0 %v323
        %v398 = vpop.f32.mrf.mxu0
        %v399 = vadd.f32 0.0, %v398
        %v400 = vpop.f32.mrf.mxu0
        %401 = vmatprep.mubr.f32.mxu0 0.0
        %402 = vmatmul.mubr.f32.gmra.mxu0 %v326
        %v403 = vpop.f32.mrf.mxu0
        %v404 = vadd.f32 0.0, %v403
        %v405 = vpop.f32.mrf.mxu0
        %406 = vdwg.mxu0
        %v407 = vmul.f32 %v399, 0.0009765625
        %v408 = vmul.f32 %v404, 0.0009765625
        %v409 = vmul.f32 %v399, %v407
        %v410 = vmul.f32 %v404, %v408
        %413 = vrot.lane.b32.xlu0 %v409, 1
        %v414 = vpop.permute.xlu0 %413
        %415 = vrot.lane.b32.xlu0 %v410, 1
        %v416 = vpop.permute.xlu0 %415
        %v419 = vsub.f32 %v399, %v414
        %v420 = vsub.f32 %v404, %v416
        %v421 = vmax.f32 %v419, 0.0
        %v422 = vmax.f32 %v420, 0.0
        %v423 = vmul.f32 %v421, 0.0009775171
        %v424 = vmul.f32 %v422, 0.0009775171
        %v425 = vrsqrt.pop %v423
        %v426 = vmul.f32 %v423, %v425
        %vm427 = vcmp.eq.f32.partialorder %v423, inf
        %v428 = vsel %vm427, %v423, %v426
        %vm429 = vcmp.eq.f32.partialorder %v423, 0.0
        %v430 = vand.u32 %v423, 2147483648
        %v431 = vsel %vm429, %v430, %v428
        %v432 = vrsqrt.pop %v424
        %v433 = vmul.f32 %v424, %v432
        %vm434 = vcmp.eq.f32.partialorder %v424, inf
        %v435 = vsel %vm434, %v424, %v433
        %vm436 = vcmp.eq.f32.partialorder %v424, 0.0
        %v437 = vand.u32 %v424, 2147483648
        %v438 = vsel %vm436, %v437, %v435
        %v439 = vadd.f32 %v431, 1e-10
        %v440 = vadd.f32 %v438, 1e-10
        %443 = vrot.lane.b32.xlu0 %v439, 127
        %v444 = vpop.permute.xlu0 %443
        %445 = vrot.lane.b32.xlu0 %v440, 127
        %v446 = vpop.permute.xlu0 %445
        %v449 = vrcp.pop %v444
        %v450 = vmul.f32 %v223, %v449
        %v451 = vrcp.pop %v446
        %v452 = vmul.f32 %v224, %v451
        %v453 = vmul.f32 %v407, %v450
        %v454 = vmul.f32 %v408, %v452
        %457 = vrot.lane.b32.xlu0 %v453, 1
        %v458 = vpop.permute.xlu0 %457
        %459 = vrot.lane.b32.xlu0 %v454, 1
        %v460 = vpop.permute.xlu0 %459
        %v463 = vsub.f32 %v223, %v458
        %v464 = vsub.f32 %v224, %v460
        %466 = vset.pattern.permute.xlu0 0
        %467 = vperm.xlu0 %466, %v450
        %v468 = vpop.permute.xlu0 %467
        %471 = vset.pattern.permute.xlu0 0
        %472 = vperm.xlu0 %471, %v452
        %v473 = vpop.permute.xlu0 %472
        %v475 = vmul.f32 %v219, %v468
        %v476 = vmul.f32 %v220, %v468
        %v477 = vmul.f32 %v221, %v473
        %v478 = vmul.f32 %v222, %v473
        %480 = vset.pattern.permute.xlu0 1
        %481 = vperm.xlu0 %480, %v463
        %v482 = vpop.permute.xlu0 %481
        %485 = vset.pattern.permute.xlu0 1
        %486 = vperm.xlu0 %485, %v464
        %v487 = vpop.permute.xlu0 %486
        %v489 = vadd.f32 %v475, %v482
        %v490 = vadd.f32 %v476, %v482
        %v491 = vadd.f32 %v477, %v487
        %v492 = vadd.f32 %v478, %v487
        %v493 = vxor.u32 %v489, 2147483648
        %v494 = vxor.u32 %v490, 2147483648
        %v495 = vxor.u32 %v491, 2147483648
        %v496 = vxor.u32 %v492, 2147483648
        %v497 = vmul.f32 %v493, 1.442695
        %v498 = vpow.pop %v497
        %v499 = vmul.f32 %v494, 1.442695
        %v500 = vpow.pop %v499
        %v501 = vmul.f32 %v495, 1.442695
        %v502 = vpow.pop %v501
        %v503 = vmul.f32 %v496, 1.442695
        %v504 = vpow.pop %v503
        %v505 = vadd.f32 %v498, 1.0
        %v506 = vadd.f32 %v500, 1.0
        %v507 = vadd.f32 %v502, 1.0
        %v508 = vadd.f32 %v504, 1.0
        %v509 = vrcp.pop %v505
        %v510 = vmul.f32 1.0, %v509
        %v511 = vrcp.pop %v506
        %v512 = vmul.f32 1.0, %v511
        %v513 = vrcp.pop %v507
        %v514 = vmul.f32 1.0, %v513
        %v515 = vrcp.pop %v508
        %v516 = vmul.f32 1.0, %v515
        %v517 = vmul.f32 %v510, %v219
        %v518 = vmul.f32 %v512, %v220
        %v519 = vmul.f32 %v514, %v221
        %v520 = vmul.f32 %v516, %v222
        %522 = vset.pattern.permute.xlu0 2
        %523 = vperm.xlu0 %522, %v223
        %v524 = vpop.permute.xlu0 %523
        %527 = vset.pattern.permute.xlu0 2
        %528 = vperm.xlu0 %527, %v224
        %v529 = vpop.permute.xlu0 %528
        %v531 = vmul.f32 %v524, %v517
        %v532 = vmul.f32 %v524, %v518
        %v533 = vmul.f32 %v529, %v519
        %v534 = vmul.f32 %v529, %v520
        %v535 = vsub.f32 %v517, %v531
        %v536 = vsub.f32 %v518, %v532
        %v537 = vsub.f32 %v519, %v533
        %v538 = vsub.f32 %v520, %v534
        %539 = vset.pattern.permute.xlu0 3
        %540 = vperm.xlu0 %539, %v223
        %v541 = vpop.permute.xlu0 %540
        %543 = vset.pattern.permute.xlu0 3
        %544 = vperm.xlu0 %543, %v224
        %v545 = vpop.permute.xlu0 %544
        %v547 = vmul.f32 %v541, %v537
        %v548 = vmul.f32 %v541, %v538
        %v549 = vmul.f32 %v545, %v535
        %v550 = vmul.f32 %v545, %v536
        %v551 = vadd.f32 %v531, %v547
        %v552 = vadd.f32 %v532, %v548
        %v553 = vadd.f32 %v533, %v549
        %v554 = vadd.f32 %v534, %v550
        %v555 = vsub.f32 1.0, %v223
        %v556 = vsub.f32 1.0, %v224
        %558 = vset.pattern.permute.xlu0 3
        %559 = vperm.xlu0 %558, %v555
        %v560 = vpop.permute.xlu0 %559
        %563 = vset.pattern.permute.xlu0 3
        %564 = vperm.xlu0 %563, %v556
        %v565 = vpop.permute.xlu0 %564
        %v567 = vmul.f32 %v560, %v537
        %v568 = vmul.f32 %v560, %v538
        %v569 = vmul.f32 %v565, %v535
        %v570 = vmul.f32 %v565, %v536
        %v571 = vadd.f32 %v551, %v567
        %v572 = vadd.f32 %v552, %v568
        %v573 = vadd.f32 %v553, %v569
        %v574 = vadd.f32 %v554, %v570
        %575 = vst [vmem:[%s216] sm:$0xff] %v571
        %576 = vst [vmem:[%s216 + $0x8] sm:$0xff] %v572
        %577 = vst [vmem:[%s216 + $0x10] sm:$0xff] %v573
        %578 = vst [vmem:[%s216 + $0x18] sm:$0xff] %v574
        %s579 = sand.u32 %s118, 1
        %s580 = scalar_lea.sflag [#allocation4], %s579
        %s581 = sand.u32 %s118, 1
        %s582 = smul.addr %s581, 32
        %s583 = scalar_lea.vmem [#allocation5], %s582
        // Predicated region
        $region41: #{tpu_custom_call.1} parent=35 // pred_check
          %p584 = pneg %p128
        $region42: #{tpu_custom_call.1} parent=35 // pred_check_branch
          %586 = sbr.rel (%p584) target = $region44
        $region43: #{tpu_custom_call.1} parent=35 // pred_region
          %s587 = smul.u32 2, %s21
          %s589 = ssub.s32 512, 512
          %590 = vsyncadd %s580, %s589
          %s591 = smul.addr %s587, 2
          %s592 = smul.addr %s591, 128
          %s593 = scalar_lea.hbm %s4, %s592
          %s594 = sshll.u32 %s583, 4
          %s595 = int_to_ptr.vmem [resolvable:$true] %s594
          %600 = dma.vmem_to_hbm [thread:$0]  %s595, 512, %s593, %s580, 256, 256, 16
        $region44: #{tpu_custom_call.1} parent=35 // pred_fallthru
          _
      $region36: #{tpu_custom_call.1} parent=5 // pred_fallthru
        _
      %p601 = scmp.le.s32.totalorder 2, %s16
      // Predicated region
      $region45: #{tpu_custom_call.1} parent=5 // pred_check
        %p602 = pneg %p601
      $region46: #{tpu_custom_call.1} parent=5 // pred_check_branch
        %604 = sbr.rel (%p602) target = $region48
      $region47: #{tpu_custom_call.1} parent=5 // pred_region
        %s605 = ssub.s32 %s16, 2
        // Predicated region
        $region49: #{tpu_custom_call.1} parent=47 // pred_check
          %p606 = pneg %p134
        $region50: #{tpu_custom_call.1} parent=47 // pred_check_branch
          %608 = sbr.rel (%p606) target = $region52
        $region51: #{tpu_custom_call.1} parent=47 // pred_region
          %s609 = sand.u32 %s119, 1
          %s610 = scalar_lea.sflag [#allocation4], %s609
          %s611 = sand.u32 %s119, 1
          %s612 = smul.addr %s611, 32
          %s613 = scalar_lea.vmem [#allocation5], %s612
          %614 = dma.done %s610, 512
        $region52: #{tpu_custom_call.1} parent=47 // pred_fallthru
          _
      $region48: #{tpu_custom_call.1} parent=5 // pred_fallthru
        _
    $region6: #{tpu_custom_call.1} parent=1 // loop_footer
      %s20 = sadd.s32 1, %s16
    $region7: #{tpu_custom_call.1} parent=1 // loop_footer_branch
      %15 = sbr.rel target = $region3
    $region8: #{tpu_custom_call.1} parent=1 // loop_exit
      _
    %615 = vsyncpa [#allocation3], 1
    %s616 = scalar_lea.sflag [#allocation3], 1
    %617 = vsyncpa %s616, 1
    %618 = vsyncpa [#allocation4], 1
    %s619 = scalar_lea.sflag [#allocation4], 1
    %620 = vsyncpa %s619, 1

</llo_original>
